<compile_context>
chip_gen: v6e
topology: v6e:2x2x1
jax: 0.10.0
libtpu: 0.0.40
codegen_flags: <defaults>
</compile_context>

<pallas_src>
import functools

import jax
import jax.numpy as jnp
from jax import lax
from jax.experimental import pallas as pl
from jax.experimental.pallas import tpu as pltpu

EPS = 1e-5
LANE = 128


def _round_up(n, m):
    return ((n + m - 1) // m) * m


# ---------------------------------------------------------------------------
# In-kernel helpers
# ---------------------------------------------------------------------------
def _masked_rows(h, tile_b, b_actual):
    """Zero out padded batch rows so they don't pollute BN statistics."""
    if b_actual % tile_b == 0:
        return h
    rows = pl.program_id(0) * tile_b + lax.broadcasted_iota(jnp.int32, h.shape, 0)
    return jnp.where(rows < b_actual, h, 0.0)


def _write_partial_stats(h, stats_ref, tile_b, b_actual):
    """Emit this tile's (sum, sum-of-squares) as two dense (1, Hp) row stores."""
    hm = _masked_rows(h, tile_b, b_actual)
    stats_ref[:, 0:1, :] = jnp.sum(hm, axis=0, keepdims=True)[None]
    stats_ref[:, 1:2, :] = jnp.sum(hm * hm, axis=0, keepdims=True)[None]


def _bn_scale_shift(st, gamma, beta, inv_n):
    """Full-batch training-mode BN, folded with gamma/beta into one scale/shift.

    st: (n_bt, 2, Hp) per-tile partial stats (already resident in VMEM).
    The reduction over n_bt rows is a handful of VPU adds -> negligible.
    """
    s = jnp.sum(st, axis=0)                              # (2, Hp)
    mean = s[0:1] * inv_n
    var = jnp.maximum(s[1:2] * inv_n - mean * mean, 0.0)  # biased var (PyTorch fwd)
    scale = gamma * lax.rsqrt(var + EPS)                  # padded gammas are 0 -> padded lanes die
    shift = beta - mean * scale
    return scale, shift


# ---------------------------------------------------------------------------
# Kernels (one pallas_call per BN boundary; earlier stages recomputed in-kernel)
# ---------------------------------------------------------------------------
def _stage1_kernel(x_ref, w1_ref, st1_ref, *, tile_b, b_actual):
    """h1 = x @ W1 (bias folded away by BN); emit per-tile stats for BN1."""
    h1 = jnp.dot(x_ref[...], w1_ref[...], preferred_element_type=jnp.float32)
    _write_partial_stats(h1, st1_ref, tile_b, b_actual)


def _stage2_kernel(x_ref, w1_ref, w2_ref, gb_ref, st1_ref, st2_ref, *,
                   inv_n, tile_b, b_actual):
    """Recompute h1, apply BN1+tanh, h2 = a1 @ W2; emit per-tile stats for BN2."""
    h1 = jnp.dot(x_ref[...], w1_ref[...], preferred_element_type=jnp.float32)
    sc1, sh1 = _bn_scale_shift(st1_ref[...], gb_ref[0:1, :], gb_ref[1:2, :], inv_n)
    a1 = jnp.tanh(h1 * sc1 + sh1)
    h2 = jnp.dot(a1, w2_ref[...], preferred_element_type=jnp.float32)
    _write_partial_stats(h2, st2_ref, tile_b, b_actual)


def _stage3_kernel(x_ref, w1_ref, w2_ref, w3_ref, b3_ref, gb_ref,
                   st1_ref, st2_ref, y_ref, *, inv_n):
    """Recompute h1, h2; apply both BN+tanh; y = a2 @ W3 + b3 (identity last act)."""
    h1 = jnp.dot(x_ref[...], w1_ref[...], preferred_element_type=jnp.float32)
    sc1, sh1 = _bn_scale_shift(st1_ref[...], gb_ref[0:1, :], gb_ref[1:2, :], inv_n)
    a1 = jnp.tanh(h1 * sc1 + sh1)
    h2 = jnp.dot(a1, w2_ref[...], preferred_element_type=jnp.float32)
    sc2, sh2 = _bn_scale_shift(st2_ref[...], gb_ref[2:3, :], gb_ref[3:4, :], inv_n)
    a2 = jnp.tanh(h2 * sc2 + sh2)
    y = jnp.dot(a2, w3_ref[...], preferred_element_type=jnp.float32) + b3_ref[...]
    y_ref[...] = y.astype(y_ref.dtype)


# ---------------------------------------------------------------------------
# Parameter prep + wrapper
# ---------------------------------------------------------------------------
def prepare_params(p, in_dim, hidden_dim, out_dim):
    """Pad hidden feature dim to 128 lanes (lane-dense matmuls / stores).

    Biases of the first two Linears are dropped (exactly cancelled by BN).
    gamma/beta are packed into one (4, Hp) array; padded gammas/betas are zero so
    padded lanes produce exactly 0 after BN+tanh and never leak into later matmuls.
    W3 and b3 are kept at the TRUE output width (out_dim lanes).
    """
    Hp = _round_up(hidden_dim, LANE)

    def pad(a, rows, cols):
        out = jnp.zeros((rows, cols), jnp.float32)
        return out.at[:a.shape[0], :a.shape[1]].set(a)

    gb = jnp.concatenate(
        [pad(p["g1"], 1, Hp), pad(p["be1"], 1, Hp),
         pad(p["g2"], 1, Hp), pad(p["be2"], 1, Hp)], axis=0)       # (4, Hp)
    return dict(
        w1=pad(p["w1"], in_dim, Hp),          # (in_dim, Hp)
        w2=pad(p["w2"], Hp, Hp),              # (Hp, Hp)
        w3=pad(p["w3"], Hp, out_dim),         # (Hp, out_dim)  true output width
        b3=jnp.asarray(p["b3"], jnp.float32), # (1, out_dim)
        gb=gb,
        dims=(in_dim, hidden_dim, out_dim),
    )


def decoder1d_forward(x, prepped, *, tile_b=2048):
    """x: (B, in_dim) float32.  prepped: output of prepare_params."""
    in_dim, _, out_dim = prepped["dims"]
    B = x.shape[0]
    Hp = prepped["w2"].shape[1]

    # Large tiles amortize the ~0.35us/grid-step overhead, but clamp so the grid has
    # at least 2 tiles when possible (v7x megacore gets both TCs busy) and we don't
    # pad B all the way up to tile_b.
    tb = min(int(tile_b), _round_up(pl.cdiv(B, 2), 8))
    tb = max(8, _round_up(tb, 8))
    Bp = _round_up(B, tb)
    n_bt = Bp // tb
    xp = x if Bp == B else jnp.pad(x, ((0, Bp - B), (0, 0)))
    inv_n = 1.0 / float(B)

    cparams = pltpu.CompilerParams(
        dimension_semantics=("parallel",),        # megacore-friendly (v7x: 2 TCs)
        vmem_limit_bytes=32 * 1024 * 1024,        # tiles are a few MiB; safe on all gens
    )

    x_spec = pl.BlockSpec((tb, in_dim), lambda i: (i, 0))
    const2 = lambda shape: pl.BlockSpec(shape, lambda i: (0, 0))           # resident
    stats_out_spec = pl.BlockSpec((1, 2, Hp), lambda i: (i, 0, 0))
    stats_in_spec = pl.BlockSpec((n_bt, 2, Hp), lambda i: (0, 0, 0))       # resident
    stats_shape = jax.ShapeDtypeStruct((n_bt, 2, Hp), jnp.float32)

    # stage 1: h1 = x @ W1, per-tile BN1 stats (h1 itself never hits HBM)
    st1 = pl.pallas_call(
        functools.partial(_stage1_kernel, tile_b=tb, b_actual=B),
        grid=(n_bt,),
        in_specs=[x_spec, const2(prepped["w1"].shape)],
        out_specs=stats_out_spec,
        out_shape=stats_shape,
        compiler_params=cparams,
    )(xp, prepped["w1"])

    # stage 2: recompute h1, BN1+tanh, h2 = a1 @ W2, per-tile BN2 stats
    st2 = pl.pallas_call(
        functools.partial(_stage2_kernel, inv_n=inv_n, tile_b=tb, b_actual=B),
        grid=(n_bt,),
        in_specs=[x_spec, const2(prepped["w1"].shape), const2(prepped["w2"].shape),
                  const2(prepped["gb"].shape), stats_in_spec],
        out_specs=stats_out_spec,
        out_shape=stats_shape,
        compiler_params=cparams,
    )(xp, prepped["w1"], prepped["w2"], prepped["gb"], st1)

    # stage 3: recompute h1,h2, both BN+tanh, y = a2 @ W3 + b3 (identity last act)
    y = pl.pallas_call(
        functools.partial(_stage3_kernel, inv_n=inv_n),
        grid=(n_bt,),
        in_specs=[x_spec, const2(prepped["w1"].shape), const2(prepped["w2"].shape),
                  const2(prepped["w3"].shape), const2(prepped["b3"].shape),
                  const2(prepped["gb"].shape), stats_in_spec, stats_in_spec],
        out_specs=pl.BlockSpec((tb, out_dim), lambda i: (i, 0)),
        out_shape=jax.ShapeDtypeStruct((Bp, out_dim), jnp.float32),
        compiler_params=cparams,
    )(xp, prepped["w1"], prepped["w2"], prepped["w3"], prepped["b3"],
      prepped["gb"], st1, st2)

    return y[:B]          # output already at true feature width; only row-trim remains


# ---------------------------------------------------------------------------
# Synthetic parameters + pure-JAX reference
# ---------------------------------------------------------------------------
def init_params(key, in_dim, out_dim, hidden_dim=16):
    """Deterministic synthetic parameters (shapes match the PyTorch module)."""
    ks = jax.random.split(key, 8)

    def lin(kw, kb, fan_in, fan_out):
        bound = 1.0 / jnp.sqrt(float(fan_in))
        w = jax.random.uniform(kw, (fan_in, fan_out), jnp.float32, -bound, bound)
        b = jax.random.uniform(kb, (1, fan_out), jnp.float32, -bound, bound)
        return w, b

    w1, b1 = lin(ks[0], ks[1], in_dim, hidden_dim)
    w2, b2 = lin(ks[2], ks[3], hidden_dim, hidden_dim)
    w3, b3 = lin(ks[4], ks[5], hidden_dim, out_dim)
    g1 = 1.0 + 0.1 * jax.random.normal(ks[6], (1, hidden_dim), jnp.float32)
    be1 = 0.1 * jax.random.normal(ks[7], (1, hidden_dim), jnp.float32)
    g2 = jnp.ones((1, hidden_dim), jnp.float32) * 0.9
    be2 = jnp.full((1, hidden_dim), 0.05, jnp.float32)
    return dict(w1=w1, b1=b1, g1=g1, be1=be1,
                w2=w2, b2=b2, g2=g2, be2=be2,
                w3=w3, b3=b3)


def decoder1d_ref(x, p):
    """Pure-JAX reference (training-mode BatchNorm1d, like the PyTorch default fwd)."""
    def bn(h, g, b):
        m = jnp.mean(h, axis=0, keepdims=True)
        v = jnp.mean((h - m) ** 2, axis=0, keepdims=True)
        return (h - m) / jnp.sqrt(v + EPS) * g + b

    h = jnp.tanh(bn(x @ p["w1"] + p["b1"], p["g1"], p["be1"]))
    h = jnp.tanh(bn(h @ p["w2"] + p["b2"], p["g2"], p["be2"]))
    return h @ p["w3"] + p["b3"]


if __name__ == "__main__":
    # Small shapes chosen so the batch grid has several tiles and a ragged tail
    # (72 = 32 + 32 + 8) exercising cross-tile BN stats + row masking.
    B, in_dim, hidden_dim, out_dim = 72, 4, 16, 4

    key = jax.random.PRNGKey(0)
    kx, kp = jax.random.split(key)
    x = jax.random.normal(kx, (B, in_dim), jnp.float32)
    params = init_params(kp, in_dim, out_dim, hidden_dim)
    prepped = prepare_params(params, in_dim, hidden_dim, out_dim)
    ref = decoder1d_ref(x, params)

    # Explicit small tile: 3 tiles with a ragged tail.
    out = decoder1d_forward(x, prepped, tile_b=32)
    out = jax.block_until_ready(out)
    assert out.shape == (B, out_dim)
    err = float(jnp.max(jnp.abs(out - ref)))
    assert err < 1e-4, f"max abs err (tile_b=32) = {err}"

    # Default tiling path (clamped so the grid still has 2 tiles).
    out2 = jax.block_until_ready(decoder1d_forward(x, prepped))
    err2 = float(jnp.max(jnp.abs(out2 - ref)))
    assert err2 < 1e-4, f"max abs err (default tile) = {err2}"

    print("KERNEL_OK")
</pallas_src>

<mosaic_0001>
module attributes {stable_mosaic.version = 11 : i64} {
  func.func @_stage1_kernel(%arg0: i32, %arg1: memref<32x4xf32, #tpu.memory_space<vmem>>, %arg2: memref<4x128xf32, #tpu.memory_space<vmem>>, %arg3: memref<1x2x128xf32, #tpu.memory_space<vmem>>) attributes {dimension_semantics = [#tpu.dimension_semantics<parallel>], iteration_bounds = array<i64: 3>, scalar_prefetch = 0 : i64, scratch_operands = 0 : i64, tpu.core_type = #tpu.core_type<tc>, window_params = [{transform_indices = @transform_0, window_bounds = array<i64: 32, 4>}, {pipeline_mode = #tpu.pipeline_mode<synchronous>, transform_indices = @transform_1, window_bounds = array<i64: 4, 128>}, {transform_indices = @transform_2, window_bounds = array<i64: 1, 2, 128>}]} {
    %c0 = arith.constant 0 : index
    %c0_0 = arith.constant 0 : index
    %0 = vector.load %arg1[%c0, %c0_0] : memref<32x4xf32, #tpu.memory_space<vmem>>, vector<32x4xf32>
    %c0_1 = arith.constant 0 : index
    %c0_2 = arith.constant 0 : index
    %1 = vector.load %arg2[%c0_1, %c0_2] : memref<4x128xf32, #tpu.memory_space<vmem>>, vector<4x128xf32>
    %cst = arith.constant dense<0.000000e+00> : vector<32x128xf32>
    %2 = tpu.matmul %0, %1, %cst {dimension_numbers = #tpu.dot_dimension_numbers<[1], [0], [0], [1], [0, 0, 1, 1], [], []>} : vector<32x4xf32>, vector<4x128xf32>, vector<32x128xf32> -> vector<32x128xf32>
    %c32_i32 = arith.constant 32 : i32
    %3 = arith.muli %arg0, %c32_i32 : i32
    %4 = tpu.iota {dimensions = array<i32: 0>} : vector<32x128xi32>
    %5 = vector.broadcast %3 : i32 to vector<32x128xi32>
    %6 = arith.addi %5, %4 : vector<32x128xi32>
    %c72_i32 = arith.constant 72 : i32
    %7 = vector.broadcast %c72_i32 : i32 to vector<32x128xi32>
    %8 = arith.cmpi slt, %6, %7 : vector<32x128xi32>
    %cst_3 = arith.constant 0.000000e+00 : f32
    %9 = vector.broadcast %cst_3 : f32 to vector<32x128xf32>
    %10 = arith.select %8, %2, %9 : vector<32x128xi1>, vector<32x128xf32>
    %cst_4 = arith.constant dense<0.000000e+00> : vector<128xf32>
    %11 = vector.multi_reduction <add>, %10, %cst_4 [0] : vector<32x128xf32> to vector<128xf32>
    %12 = vector.shape_cast %11 : vector<128xf32> to vector<1x128xf32>
    %13 = vector.shape_cast %12 : vector<1x128xf32> to vector<1x1x128xf32>
    %c0_5 = arith.constant 0 : index
    %c0_6 = arith.constant 0 : index
    %c0_7 = arith.constant 0 : index
    %14 = vector.load %arg3[%c0_5, %c0_6, %c0_7] : memref<1x2x128xf32, #tpu.memory_space<vmem>>, vector<1x1x128xf32>
    tpu.vector_store %arg3[%c0_5, %c0_6, %c0_7], %13 {strides = array<i32>} : memref<1x2x128xf32, #tpu.memory_space<vmem>>, vector<1x1x128xf32>,
    %15 = arith.mulf %10, %10 : vector<32x128xf32>
    %cst_8 = arith.constant dense<0.000000e+00> : vector<128xf32>
    %16 = vector.multi_reduction <add>, %15, %cst_8 [0] : vector<32x128xf32> to vector<128xf32>
    %17 = vector.shape_cast %16 : vector<128xf32> to vector<1x128xf32>
    %18 = vector.shape_cast %17 : vector<1x128xf32> to vector<1x1x128xf32>
    %c0_9 = arith.constant 0 : index
    %c1 = arith.constant 1 : index
    %c0_10 = arith.constant 0 : index
    %19 = vector.load %arg3[%c0_9, %c1, %c0_10] : memref<1x2x128xf32, #tpu.memory_space<vmem>>, vector<1x1x128xf32>
    tpu.vector_store %arg3[%c0_9, %c1, %c0_10], %18 {strides = array<i32>} : memref<1x2x128xf32, #tpu.memory_space<vmem>>, vector<1x1x128xf32>,
    return
  }
  func.func @transform_0(%arg0: i32) -> (i32, i32) {
    %c0_i32 = arith.constant 0 : i32
    %c0_i32_0 = arith.constant 0 : i32
    return %arg0, %c0_i32 : i32, i32
  }
  func.func @transform_1(%arg0: i32) -> (i32, i32) {
    %c0_i32 = arith.constant 0 : i32
    %c0_i32_0 = arith.constant 0 : i32
    %c0_i32_1 = arith.constant 0 : i32
    return %c0_i32, %c0_i32_0 : i32, i32
  }
  func.func @transform_2(%arg0: i32) -> (i32, i32, i32) {
    %c0_i32 = arith.constant 0 : i32
    %c0_i32_0 = arith.constant 0 : i32
    %c0_i32_1 = arith.constant 0 : i32
    return %arg0, %c0_i32, %c0_i32_0 : i32, i32, i32
  }
}

</mosaic_0001>

<llo_original>
// kernel: tpu_custom_call.1
$region0: #{tpu_custom_call.1}
  #allocation0 [shape = 'u32[]', space=smem, size = 0x4, offset = 0x4, fixed_abs, tag = 'smem constant byte address 0x4 - core index']
  #allocation1 [shape = 'u32[144,128]{1,0:T(1,128)}', space=vmem, size = 0x12000, scoped, tag = 'internal scratch']
  %s0 = inlined_call_operand.vmem [shape: f32[96,4], index: 0, kind: input, shape index: {}]
  %s1 = inlined_call_operand.vmem [shape: f32[4,128], index: 1, kind: input, shape index: {}]
  %s2 = inlined_call_operand.hbm [shape: f32[3,2,128], index: 2, kind: output, shape index: {}]
  %s3 = sld [smem:[#allocation0]]
  $region41: #{tpu_custom_call.1} parent=0
    _
  %s5 = ssub.s32 1, %s3
  %s6 = scalar_select 0, %s5, %s3
  $region1: #{tpu_custom_call.1} parent=0
    #allocation2 [shape = 'u8[2048]{0}', space=vmem, size = 0x800, scoped, tag = 'output window, operand 0']
    #allocation3 [shape = 's32[2]{0}', space=sflag, size = 0x8, scoped, tag = 'scoped memory for tpu_custom_call.1']
    %7 = vsyncpa [#allocation3], 0
    %s8 = scalar_lea.sflag [#allocation3], 1
    %9 = vsyncpa %s8, 0
    loop: start=0, step=1, limit=5
    $region2: #{tpu_custom_call.1} parent=1 // loop_pre_header
      _
    $region3: #{tpu_custom_call.1} parent=1 // loop_header
      %s11 = sphi 0, %s15
      %p12 = scmp.ge.s32.totalorder %s11, 5
      %s21 = sphi 0, %s23
      %s24 = sphi 0, %s21
      %s25 = sphi 0, %s24
      %s41 = sphi 0, %s25
      %s45 = sphi 0, %s45
      %s47 = sphi 0, %s45
      %s48 = sphi 0, %s47
      %s62 = sphi 0, %s48
      %s68 = sphi 0, %s70
      %s71 = sphi 0, %s68
      %s72 = sphi 0, %s71
      %s88 = sphi 0, %s72
    $region4: #{tpu_custom_call.1} parent=1 // loop_header_branch
      %14 = sbr.rel (%p12) target = $region8
    $region5: #{tpu_custom_call.1} parent=1 // loop_body
      %s16 = ssub.s32 %s11, 1
      %s17 = ssub.s32 %s11, 2
      %s18 = sadd.s32 %s11, 1
      %s19 = ssub.s32 %s11, %s18
      %p20 = scmp.eq.s32.totalorder %s19, 0
      %s22 = sadd.s32 %s21, 1
      %s23 = scalar_select %p20, %s21, %s22
      %p26 = pneg %p20
      %p27 = scmp.eq.s32.totalorder %s11, 2
      %p28 = por %p26, %p27
      %p29 = scmp.ne.s32.totalorder %s21, %s24
      %p30 = scmp.eq.s32.totalorder %s11, 0
      %p31 = por %p29, %p30
      %p32 = scmp.ne.s32.totalorder %s21, %s24
      %p33 = scmp.eq.s32.totalorder %s16, 2
      %p34 = por %p32, %p33
      %p35 = scmp.ne.s32.totalorder %s24, %s25
      %p36 = scmp.eq.s32.totalorder %s16, 0
      %p37 = por %p35, %p36
      %p38 = scmp.ne.s32.totalorder %s24, %s25
      %p39 = scmp.eq.s32.totalorder %s17, 2
      %p40 = por %p38, %p39
      %p42 = scmp.ne.s32.totalorder %s25, %s41
      %p43 = scmp.eq.s32.totalorder %s17, 0
      %p44 = por %p42, %p43
      %s46 = sadd.s32 %s45, 1
      %p49 = scmp.eq.s32.totalorder %s11, 2
      %p50 = scmp.ne.s32.totalorder %s45, %s47
      %p51 = scmp.eq.s32.totalorder %s11, 0
      %p52 = por %p50, %p51
      %p53 = scmp.ne.s32.totalorder %s45, %s47
      %p54 = scmp.eq.s32.totalorder %s16, 2
      %p55 = por %p53, %p54
      %p56 = scmp.ne.s32.totalorder %s47, %s48
      %p57 = scmp.eq.s32.totalorder %s16, 0
      %p58 = por %p56, %p57
      %p59 = scmp.ne.s32.totalorder %s47, %s48
      %p60 = scmp.eq.s32.totalorder %s17, 2
      %p61 = por %p59, %p60
      %p63 = scmp.ne.s32.totalorder %s48, %s62
      %p64 = scmp.eq.s32.totalorder %s17, 0
      %p65 = por %p63, %p64
      %s66 = ssub.s32 %s11, %s18
      %p67 = scmp.eq.s32.totalorder %s66, 0
      %s69 = sadd.s32 %s68, 1
      %s70 = scalar_select %p67, %s68, %s69
      %p73 = pneg %p67
      %p74 = scmp.eq.s32.totalorder %s11, 2
      %p75 = por %p73, %p74
      %p76 = scmp.ne.s32.totalorder %s68, %s71
      %p77 = scmp.eq.s32.totalorder %s11, 0
      %p78 = por %p76, %p77
      %p79 = scmp.ne.s32.totalorder %s68, %s71
      %p80 = scmp.eq.s32.totalorder %s16, 2
      %p81 = por %p79, %p80
      %p82 = scmp.ne.s32.totalorder %s71, %s72
      %p83 = scmp.eq.s32.totalorder %s16, 0
      %p84 = por %p82, %p83
      %p85 = scmp.ne.s32.totalorder %s71, %s72
      %p86 = scmp.eq.s32.totalorder %s17, 2
      %p87 = por %p85, %p86
      %p89 = scmp.ne.s32.totalorder %s72, %s88
      %p90 = scmp.eq.s32.totalorder %s17, 0
      %p91 = por %p89, %p90
      %p92 = scmp.le.s32.totalorder 1, %s11
      %p93 = scmp.lt.s32.totalorder %s11, 4
      %p94 = pnand %p92, %p93
      %p95 = pneg %p94
      // Predicated region
      $region9: #{tpu_custom_call.1} parent=5 // pred_check
        _
      $region10: #{tpu_custom_call.1} parent=5 // pred_check_branch
        %97 = sbr.rel (%p94) target = $region12
      $region11: #{tpu_custom_call.1} parent=5 // pred_region
        %s98 = ssub.s32 %s11, 1
        // Predicated region
        $region13: #{tpu_custom_call.1} parent=11 // pred_check
          %p99 = pneg %p58
        $region14: #{tpu_custom_call.1} parent=11 // pred_check_branch
          %101 = sbr.rel (%p99) target = $region16
        $region15: #{tpu_custom_call.1} parent=11 // pred_region
          _
        $region16: #{tpu_custom_call.1} parent=11 // pred_fallthru
          _
      $region12: #{tpu_custom_call.1} parent=5 // pred_fallthru
        _
      %p102 = scmp.lt.s32.totalorder %s11, 3
      // Predicated region
      $region17: #{tpu_custom_call.1} parent=5 // pred_check
        %p103 = pneg %p102
      $region18: #{tpu_custom_call.1} parent=5 // pred_check_branch
        %105 = sbr.rel (%p103) target = $region20
      $region19: #{tpu_custom_call.1} parent=5 // pred_region
        // Predicated region
        $region21: #{tpu_custom_call.1} parent=19 // pred_check
          %p106 = pneg %p31
        $region22: #{tpu_custom_call.1} parent=19 // pred_check_branch
          %108 = sbr.rel (%p106) target = $region24
        $region23: #{tpu_custom_call.1} parent=19 // pred_region
          %s109 = smul.u32 4, %s11
          %p110 = scmp.lt.s32.totalorder %s109, 11
          %s111 = scalar_select %p110, %s109, 11
          %s112 = smul.addr %s111, 8
          %s113 = scalar_lea.vmem %s0, %s112
          %s114 = smul.u32 4, %s11
        $region24: #{tpu_custom_call.1} parent=19 // pred_fallthru
          _
      $region20: #{tpu_custom_call.1} parent=5 // pred_fallthru
        _
      %p115 = scmp.le.s32.totalorder 1, %s11
      %p116 = scmp.lt.s32.totalorder %s11, 4
      %p117 = pnand %p115, %p116
      %p118 = pneg %p117
      // Predicated region
      $region25: #{tpu_custom_call.1} parent=5 // pred_check
        _
      $region26: #{tpu_custom_call.1} parent=5 // pred_check_branch
        %120 = sbr.rel (%p117) target = $region28
      $region27: #{tpu_custom_call.1} parent=5 // pred_region
        %s121 = ssub.s32 %s11, 1
        %s122 = smul.u32 4, %s16
        %p123 = scmp.lt.s32.totalorder %s122, 11
        %s124 = scalar_select %p123, %s122, 11
        %s125 = smul.addr %s124, 8
        %s126 = scalar_lea.vmem %s0, %s125
        %p127 = pneg %p37
        %p128 = pneg %p34
        %p129 = pneg %p58
        %p130 = pneg %p55
        %p131 = pneg %p84
        %p132 = pneg %p81
        %s133 = sand.u32 %s71, 1
        %s134 = scalar_lea.sflag [#allocation3], %s133
        %s135 = sand.u32 %s71, 1
        %s136 = smul.addr %s135, 2
        %s137 = scalar_lea.vmem [#allocation2], %s136
        %s138 = smul.u32 4, %s16
        %p139 = scmp.lt.s32.totalorder %s138, 11
        %s140 = scalar_select %p139, %s138, 11
        %s141 = smul.addr %s140, 8
        %s142 = scalar_lea.vmem %s0, %s141
        %s143 = smul.u32 4, %s16
        %v144 = vld [vmem:[%s142] sm:$0xff]
        %v145 = vld [vmem:[%s142 + $0x8] sm:$0xff]
        %v146 = vld [vmem:[%s142 + $0x10] sm:$0xff]
        %v147 = vld [vmem:[%s142 + $0x18] sm:$0xff]
        %v148 = vld [vmem:[%s1] sm:$0xf]
        %vm149 = vcmask 31744
        %v151 = vsel %vm149, %v144, 0
        %v154 = vsel %vm149, %v145, 0
        %v157 = vsel %vm149, %v146, 0
        %v160 = vsel %vm149, %v147, 0
        %vm162 = vcmask 1043456
        %v164 = vsel %vm162, %v148, 0
        %166 = vmatprep.subr.mxu0 0.0
        %167 = vmatpush1.msra.mxu0 0.0
        %168 = vmatprep.subr.mxu0 0.0
        %169 = vmatpush1.msra.mxu0 0.0
        %170 = vmatprep.subr.mxu0 0.0
        %171 = vmatpush1.msra.mxu0 0.0
        %172 = vmatprep.subr.mxu0 0.0
        %173 = vmatpush1.msra.mxu0 0.0
        %174 = vmatprep.subr.mxu0 0.0
        %175 = vmatpush1.msra.mxu0 0.0
        %176 = vmatprep.subr.mxu0 0.0
        %177 = vmatpush1.msra.mxu0 0.0
        %178 = vmatprep.subr.mxu0 0.0
        %179 = vmatpush1.msra.mxu0 0.0
        %180 = vmatprep.subr.mxu0 0.0
        %181 = vmatpush1.msra.mxu0 0.0
        %182 = vmatprep.subr.mxu0 0.0
        %183 = vmatpush1.msra.mxu0 0.0
        %184 = vmatprep.subr.mxu0 0.0
        %185 = vmatpush1.msra.mxu0 0.0
        %186 = vmatprep.subr.mxu0 0.0
        %187 = vmatpush1.msra.mxu0 0.0
        %188 = vmatprep.subr.mxu0 0.0
        %189 = vmatpush1.msra.mxu0 0.0
        %190 = vmatprep.subr.mxu0 0.0
        %191 = vmatpush1.msra.mxu0 0.0
        %192 = vmatprep.subr.mxu0 0.0
        %193 = vmatpush1.msra.mxu0 0.0
        %194 = vmatprep.subr.mxu0 0.0
        %195 = vmatpush1.msra.mxu0 0.0
        %196 = vmatprep.subr.mxu0 0.0
        %197 = vmatpush1.msra.mxu0 %v164
        %198 = vmatprep.subr.mxu0 0.0
        %199 = vmatpush2.msra.mxu0 0.0
        %200 = vmatprep.subr.mxu0 0.0
        %201 = vmatpush2.msra.mxu0 0.0
        %202 = vmatprep.subr.mxu0 0.0
        %203 = vmatpush2.msra.mxu0 0.0
        %204 = vmatprep.subr.mxu0 0.0
        %205 = vmatpush2.msra.mxu0 0.0
        %206 = vmatprep.subr.mxu0 0.0
        %207 = vmatpush2.msra.mxu0 0.0
        %208 = vmatprep.subr.mxu0 0.0
        %209 = vmatpush2.msra.mxu0 0.0
        %210 = vmatprep.subr.mxu0 0.0
        %211 = vmatpush2.msra.mxu0 0.0
        %212 = vmatprep.subr.mxu0 0.0
        %213 = vmatpush2.msra.mxu0 0.0
        %214 = vmatprep.subr.mxu0 0.0
        %215 = vmatpush2.msra.mxu0 0.0
        %216 = vmatprep.subr.mxu0 0.0
        %217 = vmatpush2.msra.mxu0 0.0
        %218 = vmatprep.subr.mxu0 0.0
        %219 = vmatpush2.msra.mxu0 0.0
        %220 = vmatprep.subr.mxu0 0.0
        %221 = vmatpush2.msra.mxu0 0.0
        %222 = vmatprep.subr.mxu0 0.0
        %223 = vmatpush2.msra.mxu0 0.0
        %224 = vmatprep.subr.mxu0 0.0
        %225 = vmatpush2.msra.mxu0 0.0
        %226 = vmatprep.subr.mxu0 0.0
        %227 = vmatpush2.msra.mxu0 0.0
        %228 = vmatprep.subr.mxu0 0.0
        %229 = vmatpush2.msra.mxu0 0.0
        %230 = vmatprep.mubr.f32.mxu0 0.0
        %231 = vmatmul.mubr.f32.gmra.mxu0 %v151
        %v232 = vpop.f32.mrf.mxu0
        %v233 = vadd.f32 0.0, %v232
        %v234 = vpop.f32.mrf.mxu0
        %235 = vmatprep.mubr.f32.mxu0 0.0
        %236 = vmatmul.mubr.f32.gmra.mxu0 %v154
        %v237 = vpop.f32.mrf.mxu0
        %v238 = vadd.f32 0.0, %v237
        %v239 = vpop.f32.mrf.mxu0
        %240 = vmatprep.mubr.f32.mxu0 0.0
        %241 = vmatmul.mubr.f32.gmra.mxu0 %v157
        %v242 = vpop.f32.mrf.mxu0
        %v243 = vadd.f32 0.0, %v242
        %v244 = vpop.f32.mrf.mxu0
        %245 = vmatprep.mubr.f32.mxu0 0.0
        %246 = vmatmul.mubr.f32.gmra.mxu0 %v160
        %v247 = vpop.f32.mrf.mxu0
        %v248 = vadd.f32 0.0, %v247
        %v249 = vpop.f32.mrf.mxu0
        %250 = vdwg.mxu0
        %s251 = smul.u32 %s16, 32
        %v252 = vlaneseq
        %v253 = vshrl.u32 %v252, 7
        %v254 = vadd.s32 %v253, 8
        %v255 = vadd.s32 %v253, 16
        %v256 = vadd.s32 %v253, 24
        %v257 = vstv %s251
        %v258 = vadd.s32 %v257, %v253
        %v259 = vadd.s32 %v257, %v254
        %v260 = vadd.s32 %v257, %v255
        %v261 = vadd.s32 %v257, %v256
        %vm262 = vcmp.lt.s32.totalorder %v258, 72
        %vm263 = vcmp.lt.s32.totalorder %v259, 72
        %vm264 = vcmp.lt.s32.totalorder %v260, 72
        %vm265 = vcmp.lt.s32.totalorder %v261, 72
        %v266 = vsel %vm262, %v233, 0.0
        %v267 = vsel %vm263, %v238, 0.0
        %v268 = vsel %vm264, %v243, 0.0
        %v269 = vsel %vm265, %v248, 0.0
        %v270 = vadd.f32 %v266, %v267
        %v271 = vadd.f32 %v270, %v268
        %v272 = vadd.f32 %v271, %v269
        %v273 = vrot.slane %v272, 4
        %v274 = vadd.f32 %v272, %v273
        %v275 = vrot.slane %v274, 2
        %v276 = vadd.f32 %v274, %v275
        %v277 = vrot.slane %v276, 1
        %v278 = vadd.f32 %v276, %v277
        %279 = vst [vmem:[%s137] sm:$0x1] %v278
        %v280 = vmul.f32 %v266, %v266
        %v281 = vmul.f32 %v267, %v267
        %v282 = vmul.f32 %v268, %v268
        %v283 = vmul.f32 %v269, %v269
        %v284 = vadd.f32 %v280, %v281
        %v285 = vadd.f32 %v284, %v282
        %v286 = vadd.f32 %v285, %v283
        %v287 = vrot.slane %v286, 4
        %v288 = vadd.f32 %v286, %v287
        %v289 = vrot.slane %v288, 2
        %v290 = vadd.f32 %v288, %v289
        %v291 = vrot.slane %v290, 1
        %v292 = vadd.f32 %v290, %v291
        %293 = vst [vmem:[%s137 + $0x1] sm:$0x1] %v292
        %s294 = sand.u32 %s71, 1
        %s295 = scalar_lea.sflag [#allocation3], %s294
        %s296 = sand.u32 %s71, 1
        %s297 = smul.addr %s296, 2
        %s298 = scalar_lea.vmem [#allocation2], %s297
        // Predicated region
        $region29: #{tpu_custom_call.1} parent=27 // pred_check
          %p299 = pneg %p81
        $region30: #{tpu_custom_call.1} parent=27 // pred_check_branch
          %301 = sbr.rel (%p299) target = $region32
        $region31: #{tpu_custom_call.1} parent=27 // pred_region
          %s303 = ssub.s32 32, 32
          %304 = vsyncadd %s295, %s303
          %s305 = smul.addr %s16, 32
          %s306 = scalar_lea.hbm %s2, %s305
          %s308 = sshll.u32 %s298, 4
          %s309 = int_to_ptr.vmem [resolvable:$true] %s308
          %311 = dma.vmem_to_hbm [thread:$0]  %s309, 32, %s306, %s295
        $region32: #{tpu_custom_call.1} parent=27 // pred_fallthru
          _
      $region28: #{tpu_custom_call.1} parent=5 // pred_fallthru
        _
      %p312 = scmp.le.s32.totalorder 2, %s11
      // Predicated region
      $region33: #{tpu_custom_call.1} parent=5 // pred_check
        %p313 = pneg %p312
      $region34: #{tpu_custom_call.1} parent=5 // pred_check_branch
        %315 = sbr.rel (%p313) target = $region36
      $region35: #{tpu_custom_call.1} parent=5 // pred_region
        %s316 = ssub.s32 %s11, 2
        // Predicated region
        $region37: #{tpu_custom_call.1} parent=35 // pred_check
          %p317 = pneg %p87
        $region38: #{tpu_custom_call.1} parent=35 // pred_check_branch
          %319 = sbr.rel (%p317) target = $region40
        $region39: #{tpu_custom_call.1} parent=35 // pred_region
          %s320 = sand.u32 %s72, 1
          %s321 = scalar_lea.sflag [#allocation3], %s320
          %s322 = sand.u32 %s72, 1
          %s323 = smul.addr %s322, 2
          %s324 = scalar_lea.vmem [#allocation2], %s323
          %325 = dma.done %s321, 32
        $region40: #{tpu_custom_call.1} parent=35 // pred_fallthru
          _
      $region36: #{tpu_custom_call.1} parent=5 // pred_fallthru
        _
    $region6: #{tpu_custom_call.1} parent=1 // loop_footer
      %s15 = sadd.s32 1, %s11
    $region7: #{tpu_custom_call.1} parent=1 // loop_footer_branch
      %10 = sbr.rel target = $region3
    $region8: #{tpu_custom_call.1} parent=1 // loop_exit
      _
    %326 = vsyncpa [#allocation3], 1
    %s327 = scalar_lea.sflag [#allocation3], 1
    %328 = vsyncpa %s327, 1

</llo_original>
